<compile_context>
chip_gen: v6e
topology: v6e:2x2x1
jax: 0.10.0
libtpu: 0.0.40
codegen_flags: <defaults>
</compile_context>

<pallas_src>
import functools

import jax
import jax.numpy as jnp
from jax import lax
from jax.experimental import pallas as pl
from jax.experimental.pallas import tpu as pltpu


# (out_features, in_features) per layer, in forward order (PyTorch Linear dims).
_LAYER_DIMS = ((32, 4), (32, 32), (4, 32), (32, 4), (32, 32), (1, 32))
_MAX_DIM = 32
_N_LAYERS = len(_LAYER_DIMS)


def _softplus_stable(v):
    # softplus(v) = max(v, 0) + log1p(exp(-|v|))   (numerically stable)
    return jnp.maximum(v, 0.0) + jnp.log1p(jnp.exp(-jnp.abs(v)))


def _mish_fast(v, bf16_eup):
    # mish(v) = v * tanh(softplus(v)) = v * p / (p + 2),  p = e^v (e^v + 2).
    # Single EUP exp + approximate EUP reciprocal instead of exp+log1p+tanh.
    # Clamping the exp argument at 20 keeps t^2 finite and leaves the ratio
    # == 1.0 to f32 precision for v >= 20, so results match the exact formula.
    vc = jnp.minimum(v, 20.0)
    if bf16_eup:
        # v6e/v7x: bf16 EUP path is ~2x faster; exp dominates the EUP budget.
        # The reciprocal stays f32 for lowering safety across generations.
        t = jnp.exp(vc.astype(jnp.bfloat16)).astype(jnp.float32)
    else:
        t = jnp.exp(vc)
    p = t * (t + 2.0)
    return v * (p * pl.reciprocal(p + 2.0, approx=True))


def lsunit_kernel(x_ref, w_ref, b_ref, o_ref, *, chunk, bf16_eup):
    # x_ref: (4, b_tile)   batch on lanes
    # w_ref: (6, 32, 32)   packed, zero-padded (out, in) weights (grid-resident)
    # b_ref: (6, 32, 1)    packed, zero-padded biases           (grid-resident)
    # o_ref: (1, b_tile)   lane-dense output
    # Load the tiny weight/bias slabs once per grid step; they become loop
    # constants of the chunk loop (a handful of vregs).
    layers = []
    for li, (out_d, in_d) in enumerate(_LAYER_DIMS):
        layers.append((w_ref[li, :out_d, :in_d], b_ref[li, :out_d, :]))

    n_chunks = x_ref.shape[1] // chunk

    def process_chunk(c, carry):
        start = pl.multiple_of(c * chunk, chunk)
        h = x_ref[:, pl.ds(start, chunk)]                        # (4, chunk)
        for li, (w, b) in enumerate(layers):
            z = jnp.dot(w, h, preferred_element_type=jnp.float32) + b
            h = _mish_fast(z, bf16_eup) if li < _N_LAYERS - 1 else _softplus_stable(z)
        o_ref[:, pl.ds(start, chunk)] = h.astype(o_ref.dtype)    # (1, chunk)
        return carry

    lax.fori_loop(0, n_chunks, process_chunk, 0)


def _default_bf16_eup():
    # bf16 EUP transcendentals only pay off on v6e / v7x (v5e EUP is f32-only).
    try:
        kind = jax.devices()[0].device_kind.lower()
    except Exception:
        return False
    return ("v6" in kind) or ("v7" in kind) or ("tpu7" in kind)


def pack_params(params):
    """Pack 6 (w, b) pairs (PyTorch layout: w (out, in), b (out,)) into two
    zero-padded slabs so the kernel only has 3 DMA'd operands total."""
    w_slab = jnp.zeros((_N_LAYERS, _MAX_DIM, _MAX_DIM), jnp.float32)
    b_slab = jnp.zeros((_N_LAYERS, _MAX_DIM, 1), jnp.float32)
    for i, ((w, b), (out_d, in_d)) in enumerate(zip(params, _LAYER_DIMS)):
        w_slab = w_slab.at[i, :out_d, :in_d].set(w.astype(jnp.float32))
        b_slab = b_slab.at[i, :out_d, 0].set(b.astype(jnp.float32))
    return w_slab, b_slab


@functools.partial(jax.jit, static_argnames=("chunk", "max_tile", "bf16_eup"))
def lsunit_forward(x, w_slab, b_slab, *, chunk=256, max_tile=8192, bf16_eup=None):
    """x: (B, 4) float32. Returns (B, 1) float32."""
    if bf16_eup is None:
        bf16_eup = _default_bf16_eup()
    B = x.shape[0]

    # Outer block: big enough to amortize the ~0.35 us per-grid-step cost,
    # small enough to keep >=8 grid steps (v7x dual-TC occupancy), always a
    # multiple of the inner 256-lane chunk. VMEM stays <1 MiB per step.
    target = -(-B // 8)                                   # cdiv(B, 8)
    b_tile = ((target + chunk - 1) // chunk) * chunk
    b_tile = max(chunk, min(max_tile, b_tile))
    grid = (pl.cdiv(B, b_tile),)                          # ragged last block OK

    xt = x.astype(jnp.float32).T                          # (4, B): batch on lanes

    out_t = pl.pallas_call(
        functools.partial(lsunit_kernel, chunk=chunk, bf16_eup=bool(bf16_eup)),
        out_shape=jax.ShapeDtypeStruct((1, B), jnp.float32),
        grid_spec=pltpu.PrefetchScalarGridSpec(
            num_scalar_prefetch=0,
            grid=grid,
            in_specs=[
                pl.BlockSpec((4, b_tile), lambda i: (0, i)),            # x block
                pl.BlockSpec((_N_LAYERS, _MAX_DIM, _MAX_DIM),
                             lambda i: (0, 0, 0)),                      # weights (resident)
                pl.BlockSpec((_N_LAYERS, _MAX_DIM, 1),
                             lambda i: (0, 0, 0)),                      # biases  (resident)
            ],
            out_specs=pl.BlockSpec((1, b_tile), lambda i: (0, i)),
        ),
        compiler_params=pltpu.CompilerParams(
            dimension_semantics=("parallel",)),           # batch blocks shard across TCs
    )(xt, w_slab, b_slab)

    return out_t.T                                        # (B, 1)


def init_params(key):
    """PyTorch nn.Linear-style uniform(-1/sqrt(fan_in), 1/sqrt(fan_in)) init,
    stored in PyTorch layout: w (out, in), b (out,)."""
    params = []
    for (out_d, in_d) in _LAYER_DIMS:
        key, kw, kb = jax.random.split(key, 3)
        bound = 1.0 / float(in_d) ** 0.5
        w = jax.random.uniform(kw, (out_d, in_d), jnp.float32, -bound, bound)
        b = jax.random.uniform(kb, (out_d,), jnp.float32, -bound, bound)
        params.append((w, b))
    return params


def reference_forward(x, params):
    """Pure-JAX reference matching the PyTorch module (exact mish/softplus)."""
    def mish(v):
        return v * jnp.tanh(jax.nn.softplus(v))
    h = x.astype(jnp.float32)
    for i, (w, b) in enumerate(params):
        h = h @ w.T + b
        h = mish(h) if i < len(params) - 1 else jax.nn.softplus(h)
    return h


if __name__ == "__main__":
    key = jax.random.PRNGKey(0)
    key, kx = jax.random.split(key)
    B = 1000   # deliberately not a multiple of the batch block / inner chunk
    x = jax.random.normal(kx, (B, 4), jnp.float32)

    params = init_params(key)
    w_slab, b_slab = pack_params(params)

    out = lsunit_forward(x, w_slab, b_slab)
    out = jax.block_until_ready(out)

    ref = reference_forward(x, params)
    assert out.shape == (B, 1), out.shape
    # Tolerance accounts for the approximate EUP reciprocal and (on v6e/v7x)
    # the bf16 exp in mish; worst-case per-activation error is a few 1e-3.
    err = float(jnp.max(jnp.abs(out - ref)))
    assert jnp.allclose(out, ref, atol=1e-2, rtol=1e-2), err

    print("KERNEL_OK")
</pallas_src>

<mosaic_0001>
module attributes {stable_mosaic.version = 11 : i64} {
  func.func @lsunit_kernel(%arg0: i32, %arg1: memref<4x256xf32, #tpu.memory_space<vmem>>, %arg2: memref<6x32x32xf32, #tpu.memory_space<vmem>>, %arg3: memref<6x32x1xf32, #tpu.memory_space<vmem>>, %arg4: memref<1x256xf32, #tpu.memory_space<vmem>>) attributes {dimension_semantics = [#tpu.dimension_semantics<parallel>], iteration_bounds = array<i64: 4>, scalar_prefetch = 0 : i64, scratch_operands = 0 : i64, tpu.core_type = #tpu.core_type<tc>, window_params = [{transform_indices = @transform_0, window_bounds = array<i64: 4, 256>}, {pipeline_mode = #tpu.pipeline_mode<synchronous>, transform_indices = @transform_1, window_bounds = array<i64: 6, 32, 32>}, {pipeline_mode = #tpu.pipeline_mode<synchronous>, transform_indices = @transform_2, window_bounds = array<i64: 6, 32, 1>}, {transform_indices = @transform_3, window_bounds = array<i64: 1, 256>}]} {
    %c0 = arith.constant 0 : index
    %c0_0 = arith.constant 0 : index
    %c0_1 = arith.constant 0 : index
    %0 = vector.load %arg2[%c0, %c0_0, %c0_1] : memref<6x32x32xf32, #tpu.memory_space<vmem>>, vector<1x32x4xf32>
    %1 = vector.shape_cast %0 : vector<1x32x4xf32> to vector<32x4xf32>
    %c0_2 = arith.constant 0 : index
    %c0_3 = arith.constant 0 : index
    %c0_4 = arith.constant 0 : index
    %2 = vector.load %arg3[%c0_2, %c0_3, %c0_4] : memref<6x32x1xf32, #tpu.memory_space<vmem>>, vector<1x32x1xf32>
    %3 = vector.shape_cast %2 : vector<1x32x1xf32> to vector<32x1xf32>
    %c1 = arith.constant 1 : index
    %c0_5 = arith.constant 0 : index
    %c0_6 = arith.constant 0 : index
    %4 = vector.load %arg2[%c1, %c0_5, %c0_6] : memref<6x32x32xf32, #tpu.memory_space<vmem>>, vector<1x32x32xf32>
    %5 = vector.shape_cast %4 : vector<1x32x32xf32> to vector<32x32xf32>
    %c1_7 = arith.constant 1 : index
    %c0_8 = arith.constant 0 : index
    %c0_9 = arith.constant 0 : index
    %6 = vector.load %arg3[%c1_7, %c0_8, %c0_9] : memref<6x32x1xf32, #tpu.memory_space<vmem>>, vector<1x32x1xf32>
    %7 = vector.shape_cast %6 : vector<1x32x1xf32> to vector<32x1xf32>
    %c2 = arith.constant 2 : index
    %c0_10 = arith.constant 0 : index
    %c0_11 = arith.constant 0 : index
    %8 = vector.load %arg2[%c2, %c0_10, %c0_11] : memref<6x32x32xf32, #tpu.memory_space<vmem>>, vector<1x4x32xf32>
    %9 = vector.shape_cast %8 : vector<1x4x32xf32> to vector<4x32xf32>
    %c2_12 = arith.constant 2 : index
    %c0_13 = arith.constant 0 : index
    %c0_14 = arith.constant 0 : index
    %10 = vector.load %arg3[%c2_12, %c0_13, %c0_14] : memref<6x32x1xf32, #tpu.memory_space<vmem>>, vector<1x4x1xf32>
    %11 = vector.shape_cast %10 : vector<1x4x1xf32> to vector<4x1xf32>
    %c3 = arith.constant 3 : index
    %c0_15 = arith.constant 0 : index
    %c0_16 = arith.constant 0 : index
    %12 = vector.load %arg2[%c3, %c0_15, %c0_16] : memref<6x32x32xf32, #tpu.memory_space<vmem>>, vector<1x32x4xf32>
    %13 = vector.shape_cast %12 : vector<1x32x4xf32> to vector<32x4xf32>
    %c3_17 = arith.constant 3 : index
    %c0_18 = arith.constant 0 : index
    %c0_19 = arith.constant 0 : index
    %14 = vector.load %arg3[%c3_17, %c0_18, %c0_19] : memref<6x32x1xf32, #tpu.memory_space<vmem>>, vector<1x32x1xf32>
    %15 = vector.shape_cast %14 : vector<1x32x1xf32> to vector<32x1xf32>
    %c4 = arith.constant 4 : index
    %c0_20 = arith.constant 0 : index
    %c0_21 = arith.constant 0 : index
    %16 = vector.load %arg2[%c4, %c0_20, %c0_21] : memref<6x32x32xf32, #tpu.memory_space<vmem>>, vector<1x32x32xf32>
    %17 = vector.shape_cast %16 : vector<1x32x32xf32> to vector<32x32xf32>
    %c4_22 = arith.constant 4 : index
    %c0_23 = arith.constant 0 : index
    %c0_24 = arith.constant 0 : index
    %18 = vector.load %arg3[%c4_22, %c0_23, %c0_24] : memref<6x32x1xf32, #tpu.memory_space<vmem>>, vector<1x32x1xf32>
    %19 = vector.shape_cast %18 : vector<1x32x1xf32> to vector<32x1xf32>
    %c5 = arith.constant 5 : index
    %c0_25 = arith.constant 0 : index
    %c0_26 = arith.constant 0 : index
    %20 = vector.load %arg2[%c5, %c0_25, %c0_26] : memref<6x32x32xf32, #tpu.memory_space<vmem>>, vector<1x1x32xf32>
    %21 = vector.shape_cast %20 : vector<1x1x32xf32> to vector<1x32xf32>
    %c5_27 = arith.constant 5 : index
    %c0_28 = arith.constant 0 : index
    %c0_29 = arith.constant 0 : index
    %22 = vector.load %arg3[%c5_27, %c0_28, %c0_29] : memref<6x32x1xf32, #tpu.memory_space<vmem>>, vector<1x1x1xf32>
    %23 = vector.shape_cast %22 : vector<1x1x1xf32> to vector<1x1xf32>
    %c0_i32 = arith.constant 0 : i32
    %c256_i32 = arith.constant 256 : i32
    %24 = arith.muli %c0_i32, %c256_i32 : i32
    %25 = tpu.assume_multiple %24, 256 : i32
    %c0_30 = arith.constant 0 : index
    %26 = arith.index_cast %25 : i32 to index
    %27 = vector.load %arg1[%c0_30, %26] : memref<4x256xf32, #tpu.memory_space<vmem>>, vector<4x256xf32>
    %cst = arith.constant dense<0.000000e+00> : vector<32x256xf32>
    %28 = tpu.matmul %1, %27, %cst {dimension_numbers = #tpu.dot_dimension_numbers<[1], [0], [0], [1], [0, 0, 1, 1], [], []>} : vector<32x4xf32>, vector<4x256xf32>, vector<32x256xf32> -> vector<32x256xf32>
    %29 = vector.broadcast %3 : vector<32x1xf32> to vector<32x256xf32>
    %30 = arith.addf %28, %29 : vector<32x256xf32>
    %cst_31 = arith.constant 2.000000e+01 : f32
    %31 = vector.broadcast %cst_31 : f32 to vector<32x256xf32>
    %32 = arith.minimumf %30, %31 : vector<32x256xf32>
    %33 = math.exp %32 : vector<32x256xf32>
    %cst_32 = arith.constant 2.000000e+00 : f32
    %34 = vector.broadcast %cst_32 : f32 to vector<32x256xf32>
    %35 = arith.addf %33, %34 : vector<32x256xf32>
    %36 = arith.mulf %33, %35 : vector<32x256xf32>
    %cst_33 = arith.constant 2.000000e+00 : f32
    %37 = vector.broadcast %cst_33 : f32 to vector<32x256xf32>
    %38 = arith.addf %36, %37 : vector<32x256xf32>
    %39 = tpu.reciprocal %38 {approx = true} : vector<32x256xf32> -> vector<32x256xf32>
    %40 = arith.mulf %36, %39 : vector<32x256xf32>
    %41 = arith.mulf %30, %40 : vector<32x256xf32>
    %cst_34 = arith.constant dense<0.000000e+00> : vector<32x256xf32>
    %42 = tpu.matmul %5, %41, %cst_34 {dimension_numbers = #tpu.dot_dimension_numbers<[1], [0], [0], [1], [0, 0, 1, 1], [], []>} : vector<32x32xf32>, vector<32x256xf32>, vector<32x256xf32> -> vector<32x256xf32>
    %43 = vector.broadcast %7 : vector<32x1xf32> to vector<32x256xf32>
    %44 = arith.addf %42, %43 : vector<32x256xf32>
    %cst_35 = arith.constant 2.000000e+01 : f32
    %45 = vector.broadcast %cst_35 : f32 to vector<32x256xf32>
    %46 = arith.minimumf %44, %45 : vector<32x256xf32>
    %47 = math.exp %46 : vector<32x256xf32>
    %cst_36 = arith.constant 2.000000e+00 : f32
    %48 = vector.broadcast %cst_36 : f32 to vector<32x256xf32>
    %49 = arith.addf %47, %48 : vector<32x256xf32>
    %50 = arith.mulf %47, %49 : vector<32x256xf32>
    %cst_37 = arith.constant 2.000000e+00 : f32
    %51 = vector.broadcast %cst_37 : f32 to vector<32x256xf32>
    %52 = arith.addf %50, %51 : vector<32x256xf32>
    %53 = tpu.reciprocal %52 {approx = true} : vector<32x256xf32> -> vector<32x256xf32>
    %54 = arith.mulf %50, %53 : vector<32x256xf32>
    %55 = arith.mulf %44, %54 : vector<32x256xf32>
    %cst_38 = arith.constant dense<0.000000e+00> : vector<4x256xf32>
    %56 = tpu.matmul %9, %55, %cst_38 {dimension_numbers = #tpu.dot_dimension_numbers<[1], [0], [0], [1], [0, 0, 1, 1], [], []>} : vector<4x32xf32>, vector<32x256xf32>, vector<4x256xf32> -> vector<4x256xf32>
    %57 = vector.broadcast %11 : vector<4x1xf32> to vector<4x256xf32>
    %58 = arith.addf %56, %57 : vector<4x256xf32>
    %cst_39 = arith.constant 2.000000e+01 : f32
    %59 = vector.broadcast %cst_39 : f32 to vector<4x256xf32>
    %60 = arith.minimumf %58, %59 : vector<4x256xf32>
    %61 = math.exp %60 : vector<4x256xf32>
    %cst_40 = arith.constant 2.000000e+00 : f32
    %62 = vector.broadcast %cst_40 : f32 to vector<4x256xf32>
    %63 = arith.addf %61, %62 : vector<4x256xf32>
    %64 = arith.mulf %61, %63 : vector<4x256xf32>
    %cst_41 = arith.constant 2.000000e+00 : f32
    %65 = vector.broadcast %cst_41 : f32 to vector<4x256xf32>
    %66 = arith.addf %64, %65 : vector<4x256xf32>
    %67 = tpu.reciprocal %66 {approx = true} : vector<4x256xf32> -> vector<4x256xf32>
    %68 = arith.mulf %64, %67 : vector<4x256xf32>
    %69 = arith.mulf %58, %68 : vector<4x256xf32>
    %cst_42 = arith.constant dense<0.000000e+00> : vector<32x256xf32>
    %70 = tpu.matmul %13, %69, %cst_42 {dimension_numbers = #tpu.dot_dimension_numbers<[1], [0], [0], [1], [0, 0, 1, 1], [], []>} : vector<32x4xf32>, vector<4x256xf32>, vector<32x256xf32> -> vector<32x256xf32>
    %71 = vector.broadcast %15 : vector<32x1xf32> to vector<32x256xf32>
    %72 = arith.addf %70, %71 : vector<32x256xf32>
    %cst_43 = arith.constant 2.000000e+01 : f32
    %73 = vector.broadcast %cst_43 : f32 to vector<32x256xf32>
    %74 = arith.minimumf %72, %73 : vector<32x256xf32>
    %75 = math.exp %74 : vector<32x256xf32>
    %cst_44 = arith.constant 2.000000e+00 : f32
    %76 = vector.broadcast %cst_44 : f32 to vector<32x256xf32>
    %77 = arith.addf %75, %76 : vector<32x256xf32>
    %78 = arith.mulf %75, %77 : vector<32x256xf32>
    %cst_45 = arith.constant 2.000000e+00 : f32
    %79 = vector.broadcast %cst_45 : f32 to vector<32x256xf32>
    %80 = arith.addf %78, %79 : vector<32x256xf32>
    %81 = tpu.reciprocal %80 {approx = true} : vector<32x256xf32> -> vector<32x256xf32>
    %82 = arith.mulf %78, %81 : vector<32x256xf32>
    %83 = arith.mulf %72, %82 : vector<32x256xf32>
    %cst_46 = arith.constant dense<0.000000e+00> : vector<32x256xf32>
    %84 = tpu.matmul %17, %83, %cst_46 {dimension_numbers = #tpu.dot_dimension_numbers<[1], [0], [0], [1], [0, 0, 1, 1], [], []>} : vector<32x32xf32>, vector<32x256xf32>, vector<32x256xf32> -> vector<32x256xf32>
    %85 = vector.broadcast %19 : vector<32x1xf32> to vector<32x256xf32>
    %86 = arith.addf %84, %85 : vector<32x256xf32>
    %cst_47 = arith.constant 2.000000e+01 : f32
    %87 = vector.broadcast %cst_47 : f32 to vector<32x256xf32>
    %88 = arith.minimumf %86, %87 : vector<32x256xf32>
    %89 = math.exp %88 : vector<32x256xf32>
    %cst_48 = arith.constant 2.000000e+00 : f32
    %90 = vector.broadcast %cst_48 : f32 to vector<32x256xf32>
    %91 = arith.addf %89, %90 : vector<32x256xf32>
    %92 = arith.mulf %89, %91 : vector<32x256xf32>
    %cst_49 = arith.constant 2.000000e+00 : f32
    %93 = vector.broadcast %cst_49 : f32 to vector<32x256xf32>
    %94 = arith.addf %92, %93 : vector<32x256xf32>
    %95 = tpu.reciprocal %94 {approx = true} : vector<32x256xf32> -> vector<32x256xf32>
    %96 = arith.mulf %92, %95 : vector<32x256xf32>
    %97 = arith.mulf %86, %96 : vector<32x256xf32>
    %cst_50 = arith.constant dense<0.000000e+00> : vector<1x256xf32>
    %98 = tpu.matmul %21, %97, %cst_50 {dimension_numbers = #tpu.dot_dimension_numbers<[1], [0], [0], [1], [0, 0, 1, 1], [], []>} : vector<1x32xf32>, vector<32x256xf32>, vector<1x256xf32> -> vector<1x256xf32>
    %99 = vector.broadcast %23 : vector<1x1xf32> to vector<1x256xf32>
    %100 = arith.addf %98, %99 : vector<1x256xf32>
    %cst_51 = arith.constant 0.000000e+00 : f32
    %101 = vector.broadcast %cst_51 : f32 to vector<1x256xf32>
    %102 = arith.maximumf %100, %101 : vector<1x256xf32>
    %103 = math.absf %100 : vector<1x256xf32>
    %cst_52 = arith.constant 0.000000e+00 : f32
    %104 = vector.broadcast %cst_52 : f32 to vector<1x256xf32>
    %105 = arith.subf %104, %103 : vector<1x256xf32>
    %106 = math.exp %105 : vector<1x256xf32>
    %107 = math.log1p %106 : vector<1x256xf32>
    %108 = arith.addf %102, %107 : vector<1x256xf32>
    %c0_53 = arith.constant 0 : index
    %109 = arith.index_cast %25 : i32 to index
    %110 = vector.load %arg4[%c0_53, %109] : memref<1x256xf32, #tpu.memory_space<vmem>>, vector<1x256xf32>
    tpu.vector_store %arg4[%c0_53, %109], %108 {strides = array<i32>} : memref<1x256xf32, #tpu.memory_space<vmem>>, vector<1x256xf32>,
    %c1_i32 = arith.constant 1 : i32
    return
  }
  func.func @transform_0(%arg0: i32) -> (i32, i32) {
    %c0_i32 = arith.constant 0 : i32
    %c0_i32_0 = arith.constant 0 : i32
    return %c0_i32, %arg0 : i32, i32
  }
  func.func @transform_1(%arg0: i32) -> (i32, i32, i32) {
    %c0_i32 = arith.constant 0 : i32
    %c0_i32_0 = arith.constant 0 : i32
    %c0_i32_1 = arith.constant 0 : i32
    %c0_i32_2 = arith.constant 0 : i32
    return %c0_i32, %c0_i32_0, %c0_i32_1 : i32, i32, i32
  }
  func.func @transform_2(%arg0: i32) -> (i32, i32, i32) {
    %c0_i32 = arith.constant 0 : i32
    %c0_i32_0 = arith.constant 0 : i32
    %c0_i32_1 = arith.constant 0 : i32
    %c0_i32_2 = arith.constant 0 : i32
    return %c0_i32, %c0_i32_0, %c0_i32_1 : i32, i32, i32
  }
  func.func @transform_3(%arg0: i32) -> (i32, i32) {
    %c0_i32 = arith.constant 0 : i32
    %c0_i32_0 = arith.constant 0 : i32
    return %c0_i32, %arg0 : i32, i32
  }
}

</mosaic_0001>

<llo_original>
// kernel: lsunit_forward.1
$region0: #{lsunit_forward.1}
  #allocation0 [shape = 'u32[]', space=smem, size = 0x4, offset = 0x4, fixed_abs, tag = 'smem constant byte address 0x4 - core index']
  #allocation1 [shape = 'u32[144,128]{1,0:T(1,128)}', space=vmem, size = 0x12000, scoped, tag = 'internal scratch']
  %s0 = inlined_call_operand.hbm [shape: f32[4,1000], index: 0, kind: input, shape index: {}]
  %s1 = inlined_call_operand.vmem [shape: f32[6,32,32], index: 1, kind: input, shape index: {}]
  %s2 = inlined_call_operand.vmem [shape: f32[6,32,1], index: 2, kind: input, shape index: {}]
  %s3 = inlined_call_operand.hbm [shape: f32[1,1000], index: 3, kind: output, shape index: {}]
  %s4 = sld [smem:[#allocation0]]
  $region49: #{lsunit_forward.1} parent=0
    _
  %s6 = ssub.s32 1, %s4
  %s7 = scalar_select 0, %s6, %s4
  $region1: #{lsunit_forward.1} parent=0
    #allocation2 [shape = 'u8[8192]{0}', space=vmem, size = 0x2000, scoped, tag = 'input window, operand 0']
    #allocation3 [shape = 's32[2]{0}', space=sflag, size = 0x8, scoped, tag = 'scoped memory for lsunit_forward.1']
    #allocation4 [shape = 's32[2]{0}', space=sflag, size = 0x8, scoped, tag = 'scoped memory for lsunit_forward.1']
    #allocation5 [shape = 'u8[2048]{0}', space=vmem, size = 0x800, scoped, tag = 'output window, operand 0']
    %8 = vsyncpa [#allocation3], 0
    %s9 = scalar_lea.sflag [#allocation3], 1
    %10 = vsyncpa %s9, 0
    %11 = vsyncpa [#allocation4], 0
    %s12 = scalar_lea.sflag [#allocation4], 1
    %13 = vsyncpa %s12, 0
    loop: start=0, step=1, limit=6
    $region2: #{lsunit_forward.1} parent=1 // loop_pre_header
      _
    $region3: #{lsunit_forward.1} parent=1 // loop_header
      %s15 = sphi 0, %s19
      %p16 = scmp.ge.s32.totalorder %s15, 6
      %s25 = sphi 0, %s27
      %s28 = sphi 0, %s25
      %s29 = sphi 0, %s28
      %s45 = sphi 0, %s29
      %s49 = sphi 0, %s49
      %s51 = sphi 0, %s49
      %s52 = sphi 0, %s51
      %s66 = sphi 0, %s52
      %s70 = sphi 0, %s70
      %s72 = sphi 0, %s70
      %s73 = sphi 0, %s72
      %s87 = sphi 0, %s73
      %s93 = sphi 0, %s95
      %s96 = sphi 0, %s93
      %s97 = sphi 0, %s96
      %s113 = sphi 0, %s97
    $region4: #{lsunit_forward.1} parent=1 // loop_header_branch
      %18 = sbr.rel (%p16) target = $region8
    $region5: #{lsunit_forward.1} parent=1 // loop_body
      %s20 = ssub.s32 %s15, 1
      %s21 = ssub.s32 %s15, 2
      %s22 = sadd.s32 %s15, 1
      %s23 = ssub.s32 %s15, %s22
      %p24 = scmp.eq.s32.totalorder %s23, 0
      %s26 = sadd.s32 %s25, 1
      %s27 = scalar_select %p24, %s25, %s26
      %p30 = pneg %p24
      %p31 = scmp.eq.s32.totalorder %s15, 3
      %p32 = por %p30, %p31
      %p33 = scmp.ne.s32.totalorder %s25, %s28
      %p34 = scmp.eq.s32.totalorder %s15, 0
      %p35 = por %p33, %p34
      %p36 = scmp.ne.s32.totalorder %s25, %s28
      %p37 = scmp.eq.s32.totalorder %s20, 3
      %p38 = por %p36, %p37
      %p39 = scmp.ne.s32.totalorder %s28, %s29
      %p40 = scmp.eq.s32.totalorder %s20, 0
      %p41 = por %p39, %p40
      %p42 = scmp.ne.s32.totalorder %s28, %s29
      %p43 = scmp.eq.s32.totalorder %s21, 3
      %p44 = por %p42, %p43
      %p46 = scmp.ne.s32.totalorder %s29, %s45
      %p47 = scmp.eq.s32.totalorder %s21, 0
      %p48 = por %p46, %p47
      %s50 = sadd.s32 %s49, 1
      %p53 = scmp.eq.s32.totalorder %s15, 3
      %p54 = scmp.ne.s32.totalorder %s49, %s51
      %p55 = scmp.eq.s32.totalorder %s15, 0
      %p56 = por %p54, %p55
      %p57 = scmp.ne.s32.totalorder %s49, %s51
      %p58 = scmp.eq.s32.totalorder %s20, 3
      %p59 = por %p57, %p58
      %p60 = scmp.ne.s32.totalorder %s51, %s52
      %p61 = scmp.eq.s32.totalorder %s20, 0
      %p62 = por %p60, %p61
      %p63 = scmp.ne.s32.totalorder %s51, %s52
      %p64 = scmp.eq.s32.totalorder %s21, 3
      %p65 = por %p63, %p64
      %p67 = scmp.ne.s32.totalorder %s52, %s66
      %p68 = scmp.eq.s32.totalorder %s21, 0
      %p69 = por %p67, %p68
      %s71 = sadd.s32 %s70, 1
      %p74 = scmp.eq.s32.totalorder %s15, 3
      %p75 = scmp.ne.s32.totalorder %s70, %s72
      %p76 = scmp.eq.s32.totalorder %s15, 0
      %p77 = por %p75, %p76
      %p78 = scmp.ne.s32.totalorder %s70, %s72
      %p79 = scmp.eq.s32.totalorder %s20, 3
      %p80 = por %p78, %p79
      %p81 = scmp.ne.s32.totalorder %s72, %s73
      %p82 = scmp.eq.s32.totalorder %s20, 0
      %p83 = por %p81, %p82
      %p84 = scmp.ne.s32.totalorder %s72, %s73
      %p85 = scmp.eq.s32.totalorder %s21, 3
      %p86 = por %p84, %p85
      %p88 = scmp.ne.s32.totalorder %s73, %s87
      %p89 = scmp.eq.s32.totalorder %s21, 0
      %p90 = por %p88, %p89
      %s91 = ssub.s32 %s15, %s22
      %p92 = scmp.eq.s32.totalorder %s91, 0
      %s94 = sadd.s32 %s93, 1
      %s95 = scalar_select %p92, %s93, %s94
      %p98 = pneg %p92
      %p99 = scmp.eq.s32.totalorder %s15, 3
      %p100 = por %p98, %p99
      %p101 = scmp.ne.s32.totalorder %s93, %s96
      %p102 = scmp.eq.s32.totalorder %s15, 0
      %p103 = por %p101, %p102
      %p104 = scmp.ne.s32.totalorder %s93, %s96
      %p105 = scmp.eq.s32.totalorder %s20, 3
      %p106 = por %p104, %p105
      %p107 = scmp.ne.s32.totalorder %s96, %s97
      %p108 = scmp.eq.s32.totalorder %s20, 0
      %p109 = por %p107, %p108
      %p110 = scmp.ne.s32.totalorder %s96, %s97
      %p111 = scmp.eq.s32.totalorder %s21, 3
      %p112 = por %p110, %p111
      %p114 = scmp.ne.s32.totalorder %s97, %s113
      %p115 = scmp.eq.s32.totalorder %s21, 0
      %p116 = por %p114, %p115
      %p117 = scmp.le.s32.totalorder 1, %s15
      %p118 = scmp.lt.s32.totalorder %s15, 5
      %p119 = pnand %p117, %p118
      %p120 = pneg %p119
      // Predicated region
      $region9: #{lsunit_forward.1} parent=5 // pred_check
        _
      $region10: #{lsunit_forward.1} parent=5 // pred_check_branch
        %122 = sbr.rel (%p119) target = $region12
      $region11: #{lsunit_forward.1} parent=5 // pred_region
        %s123 = ssub.s32 %s15, 1
        // Predicated region
        $region13: #{lsunit_forward.1} parent=11 // pred_check
          %p124 = pneg %p62
        $region14: #{lsunit_forward.1} parent=11 // pred_check_branch
          %126 = sbr.rel (%p124) target = $region16
        $region15: #{lsunit_forward.1} parent=11 // pred_region
          _
        $region16: #{lsunit_forward.1} parent=11 // pred_fallthru
          _
        // Predicated region
        $region17: #{lsunit_forward.1} parent=11 // pred_check
          %p127 = pneg %p83
        $region18: #{lsunit_forward.1} parent=11 // pred_check_branch
          %129 = sbr.rel (%p127) target = $region20
        $region19: #{lsunit_forward.1} parent=11 // pred_region
          _
        $region20: #{lsunit_forward.1} parent=11 // pred_fallthru
          _
      $region12: #{lsunit_forward.1} parent=5 // pred_fallthru
        _
      %p130 = scmp.lt.s32.totalorder %s15, 4
      // Predicated region
      $region21: #{lsunit_forward.1} parent=5 // pred_check
        %p131 = pneg %p130
      $region22: #{lsunit_forward.1} parent=5 // pred_check_branch
        %133 = sbr.rel (%p131) target = $region24
      $region23: #{lsunit_forward.1} parent=5 // pred_region
        // Predicated region
        $region25: #{lsunit_forward.1} parent=23 // pred_check
          %p134 = pneg %p35
        $region26: #{lsunit_forward.1} parent=23 // pred_check_branch
          %136 = sbr.rel (%p134) target = $region28
        $region27: #{lsunit_forward.1} parent=23 // pred_region
          %s137 = sand.u32 %s25, 1
          %s138 = scalar_lea.sflag [#allocation3], %s137
          %s139 = sand.u32 %s25, 1
          %s140 = smul.addr %s139, 8
          %s141 = scalar_lea.vmem [#allocation2], %s140
          %s142 = smul.u32 2, %s15
          %s144 = ssub.s32 128, 128
          %145 = vsyncadd %s138, %s144
          %s146 = smul.addr %s142, 64
          %s147 = scalar_lea.hbm %s0, %s146
          %s149 = sshll.u32 %s141, 4
          %s150 = int_to_ptr.vmem [resolvable:$true] %s149
          %152 = dma.hbm_to_vmem [thread:$0]  %s147, 128, %s150, %s138
        $region28: #{lsunit_forward.1} parent=23 // pred_fallthru
          _
      $region24: #{lsunit_forward.1} parent=5 // pred_fallthru
        _
      %p153 = scmp.le.s32.totalorder 1, %s15
      %p154 = scmp.lt.s32.totalorder %s15, 5
      %p155 = pnand %p153, %p154
      %p156 = pneg %p155
      // Predicated region
      $region29: #{lsunit_forward.1} parent=5 // pred_check
        _
      $region30: #{lsunit_forward.1} parent=5 // pred_check_branch
        %158 = sbr.rel (%p155) target = $region32
      $region31: #{lsunit_forward.1} parent=5 // pred_region
        %s159 = ssub.s32 %s15, 1
        %s160 = sand.u32 %s28, 1
        %s161 = scalar_lea.sflag [#allocation3], %s160
        %s162 = sand.u32 %s28, 1
        %s163 = smul.addr %s162, 8
        %s164 = scalar_lea.vmem [#allocation2], %s163
        // Predicated region
        $region33: #{lsunit_forward.1} parent=31 // pred_check
          %p165 = pneg %p41
        $region34: #{lsunit_forward.1} parent=31 // pred_check_branch
          %167 = sbr.rel (%p165) target = $region36
        $region35: #{lsunit_forward.1} parent=31 // pred_region
          %168 = dma.done %s161, 128
        $region36: #{lsunit_forward.1} parent=31 // pred_fallthru
          _
        %s169 = sand.u32 %s28, 1
        %s170 = scalar_lea.sflag [#allocation3], %s169
        %s171 = sand.u32 %s28, 1
        %s172 = smul.addr %s171, 8
        %s173 = scalar_lea.vmem [#allocation2], %s172
        %p174 = pneg %p41
        %p175 = pneg %p38
        %p176 = pneg %p62
        %p177 = pneg %p59
        %p178 = pneg %p83
        %p179 = pneg %p80
        %p180 = pneg %p109
        %p181 = pneg %p106
        %s182 = sand.u32 %s96, 1
        %s183 = scalar_lea.sflag [#allocation4], %s182
        %s184 = sand.u32 %s96, 1
        %s185 = smul.addr %s184, 2
        %s186 = scalar_lea.vmem [#allocation5], %s185
        %s187 = smul.u32 2, %s20
        %s188 = smul.u32 2, %s20
        %v189 = vld [vmem:[%s1] sm:$0xff]
        %v190 = vld [vmem:[%s1 + $0x8] sm:$0xff]
        %v191 = vld [vmem:[%s1 + $0x10] sm:$0xff]
        %v192 = vld [vmem:[%s1 + $0x18] sm:$0xff]
        %v193 = vld [vmem:[%s2] sm:$0xff]
        %v194 = vld [vmem:[%s2 + $0x8] sm:$0xff]
        %v195 = vld [vmem:[%s2 + $0x10] sm:$0xff]
        %v196 = vld [vmem:[%s2 + $0x18] sm:$0xff]
        %s197 = scalar_lea.vmem %s1, 32
        %v198 = vld [vmem:[%s197] sm:$0xff]
        %v199 = vld [vmem:[%s197 + $0x8] sm:$0xff]
        %v200 = vld [vmem:[%s197 + $0x10] sm:$0xff]
        %v201 = vld [vmem:[%s197 + $0x18] sm:$0xff]
        %s202 = scalar_lea.vmem %s2, 32
        %v203 = vld [vmem:[%s202] sm:$0xff]
        %v204 = vld [vmem:[%s202 + $0x8] sm:$0xff]
        %v205 = vld [vmem:[%s202 + $0x10] sm:$0xff]
        %v206 = vld [vmem:[%s202 + $0x18] sm:$0xff]
        %s207 = scalar_lea.vmem %s1, 64
        %v208 = vld [vmem:[%s207] sm:$0xf]
        %s209 = scalar_lea.vmem %s2, 64
        %v210 = vld [vmem:[%s209] sm:$0xf]
        %s211 = scalar_lea.vmem %s1, 96
        %v212 = vld [vmem:[%s211] sm:$0xff]
        %v213 = vld [vmem:[%s211 + $0x8] sm:$0xff]
        %v214 = vld [vmem:[%s211 + $0x10] sm:$0xff]
        %v215 = vld [vmem:[%s211 + $0x18] sm:$0xff]
        %s216 = scalar_lea.vmem %s2, 96
        %v217 = vld [vmem:[%s216] sm:$0xff]
        %v218 = vld [vmem:[%s216 + $0x8] sm:$0xff]
        %v219 = vld [vmem:[%s216 + $0x10] sm:$0xff]
        %v220 = vld [vmem:[%s216 + $0x18] sm:$0xff]
        %s221 = scalar_lea.vmem %s1, 128
        %v222 = vld [vmem:[%s221] sm:$0xff]
        %v223 = vld [vmem:[%s221 + $0x8] sm:$0xff]
        %v224 = vld [vmem:[%s221 + $0x10] sm:$0xff]
        %v225 = vld [vmem:[%s221 + $0x18] sm:$0xff]
        %s226 = scalar_lea.vmem %s2, 128
        %v227 = vld [vmem:[%s226] sm:$0xff]
        %v228 = vld [vmem:[%s226 + $0x8] sm:$0xff]
        %v229 = vld [vmem:[%s226 + $0x10] sm:$0xff]
        %v230 = vld [vmem:[%s226 + $0x18] sm:$0xff]
        %s231 = scalar_lea.vmem %s1, 160
        %v232 = vld [vmem:[%s231] sm:$0x1]
        %s233 = scalar_lea.vmem %s2, 160
        %v234 = vld [vmem:[%s233] sm:$0x1]
        %v235 = vld [vmem:[%s164] sm:$0xff]
        %237 = vset.pattern.permute.xlu0 0
        %238 = vperm.xlu0 %237, %v193
        %v239 = vpop.permute.xlu0 %238
        %242 = vset.pattern.permute.xlu0 0
        %243 = vperm.xlu0 %242, %v194
        %v244 = vpop.permute.xlu0 %243
        %247 = vset.pattern.permute.xlu0 0
        %248 = vperm.xlu0 %247, %v195
        %v249 = vpop.permute.xlu0 %248
        %252 = vset.pattern.permute.xlu0 0
        %253 = vperm.xlu0 %252, %v196
        %v254 = vpop.permute.xlu0 %253
        %v257 = vcombine.high %v235, %v235
        %vm258 = vcmask 31744
        %v260 = vsel %vm258, %v189, 0
        %v263 = vsel %vm258, %v190, 0
        %v266 = vsel %vm258, %v191, 0
        %v269 = vsel %vm258, %v192, 0
        %vm271 = vcmask 1043456
        %v272 = vsel %vm271, %v235, 0
        %v274 = vsel %vm271, %v257, 0
        %276 = vmatprep.subr.mxu0 0.0
        %277 = vmatpush1.msra.mxu0 0.0
        %278 = vmatprep.subr.mxu0 0.0
        %279 = vmatpush1.msra.mxu0 0.0
        %280 = vmatprep.subr.mxu0 0.0
        %281 = vmatpush1.msra.mxu0 0.0
        %282 = vmatprep.subr.mxu0 0.0
        %283 = vmatpush1.msra.mxu0 0.0
        %284 = vmatprep.subr.mxu0 0.0
        %285 = vmatpush1.msra.mxu0 0.0
        %286 = vmatprep.subr.mxu0 0.0
        %287 = vmatpush1.msra.mxu0 0.0
        %288 = vmatprep.subr.mxu0 0.0
        %289 = vmatpush1.msra.mxu0 0.0
        %290 = vmatprep.subr.mxu0 0.0
        %291 = vmatpush1.msra.mxu0 0.0
        %292 = vmatprep.subr.mxu0 0.0
        %293 = vmatpush1.msra.mxu0 0.0
        %294 = vmatprep.subr.mxu0 0.0
        %295 = vmatpush1.msra.mxu0 0.0
        %296 = vmatprep.subr.mxu0 0.0
        %297 = vmatpush1.msra.mxu0 0.0
        %298 = vmatprep.subr.mxu0 0.0
        %299 = vmatpush1.msra.mxu0 0.0
        %300 = vmatprep.subr.mxu0 0.0
        %301 = vmatpush1.msra.mxu0 0.0
        %302 = vmatprep.subr.mxu0 0.0
        %303 = vmatpush1.msra.mxu0 0.0
        %304 = vmatprep.subr.mxu0 0.0
        %305 = vmatpush1.msra.mxu0 0.0
        %306 = vmatprep.subr.mxu0 %v274
        %307 = vmatpush1.msra.mxu0 %v272
        %308 = vmatprep.subr.mxu0 0.0
        %309 = vmatpush2.msra.mxu0 0.0
        %310 = vmatprep.subr.mxu0 0.0
        %311 = vmatpush2.msra.mxu0 0.0
        %312 = vmatprep.subr.mxu0 0.0
        %313 = vmatpush2.msra.mxu0 0.0
        %314 = vmatprep.subr.mxu0 0.0
        %315 = vmatpush2.msra.mxu0 0.0
        %316 = vmatprep.subr.mxu0 0.0
        %317 = vmatpush2.msra.mxu0 0.0
        %318 = vmatprep.subr.mxu0 0.0
        %319 = vmatpush2.msra.mxu0 0.0
        %320 = vmatprep.subr.mxu0 0.0
        %321 = vmatpush2.msra.mxu0 0.0
        %322 = vmatprep.subr.mxu0 0.0
        %323 = vmatpush2.msra.mxu0 0.0
        %324 = vmatprep.subr.mxu0 0.0
        %325 = vmatpush2.msra.mxu0 0.0
        %326 = vmatprep.subr.mxu0 0.0
        %327 = vmatpush2.msra.mxu0 0.0
        %328 = vmatprep.subr.mxu0 0.0
        %329 = vmatpush2.msra.mxu0 0.0
        %330 = vmatprep.subr.mxu0 0.0
        %331 = vmatpush2.msra.mxu0 0.0
        %332 = vmatprep.subr.mxu0 0.0
        %333 = vmatpush2.msra.mxu0 0.0
        %334 = vmatprep.subr.mxu0 0.0
        %335 = vmatpush2.msra.mxu0 0.0
        %336 = vmatprep.subr.mxu0 0.0
        %337 = vmatpush2.msra.mxu0 0.0
        %338 = vmatprep.subr.mxu0 0.0
        %339 = vmatpush2.msra.mxu0 0.0
        %340 = vmatprep.mubr.f32.mxu0 0.0
        %341 = vmatmul.mubr.f32.gmra.mxu0 %v260
        %v342 = vpop.f32.mrf.mxu0
        %v343 = vadd.f32 %v239, %v342
        %v344 = vpop.f32.mrf.mxu0
        %v345 = vadd.f32 %v239, %v344
        %346 = vmatprep.mubr.f32.mxu0 0.0
        %347 = vmatmul.mubr.f32.gmra.mxu0 %v263
        %v348 = vpop.f32.mrf.mxu0
        %v349 = vadd.f32 %v244, %v348
        %v350 = vpop.f32.mrf.mxu0
        %v351 = vadd.f32 %v244, %v350
        %352 = vmatprep.mubr.f32.mxu0 0.0
        %353 = vmatmul.mubr.f32.gmra.mxu0 %v266
        %v354 = vpop.f32.mrf.mxu0
        %v355 = vadd.f32 %v249, %v354
        %v356 = vpop.f32.mrf.mxu0
        %v357 = vadd.f32 %v249, %v356
        %358 = vmatprep.mubr.f32.mxu0 0.0
        %359 = vmatmul.mubr.f32.gmra.mxu0 %v269
        %v360 = vpop.f32.mrf.mxu0
        %v361 = vadd.f32 %v254, %v360
        %v362 = vpop.f32.mrf.mxu0
        %v363 = vadd.f32 %v254, %v362
        %364 = vdwg.mxu0
        %v365 = vmin.f32 %v343, 20.0
        %v366 = vmin.f32 %v345, 20.0
        %v367 = vmin.f32 %v349, 20.0
        %v368 = vmin.f32 %v351, 20.0
        %v369 = vmin.f32 %v355, 20.0
        %v370 = vmin.f32 %v357, 20.0
        %v371 = vmin.f32 %v361, 20.0
        %v372 = vmin.f32 %v363, 20.0
        %v373 = vmul.f32 %v365, 1.442695
        %v374 = vpow.pop %v373
        %v375 = vmul.f32 %v366, 1.442695
        %v376 = vpow.pop %v375
        %v377 = vmul.f32 %v367, 1.442695
        %v378 = vpow.pop %v377
        %v379 = vmul.f32 %v368, 1.442695
        %v380 = vpow.pop %v379
        %v381 = vmul.f32 %v369, 1.442695
        %v382 = vpow.pop %v381
        %v383 = vmul.f32 %v370, 1.442695
        %v384 = vpow.pop %v383
        %v385 = vmul.f32 %v371, 1.442695
        %v386 = vpow.pop %v385
        %v387 = vmul.f32 %v372, 1.442695
        %v388 = vpow.pop %v387
        %v389 = vadd.f32 %v374, 2.0
        %v390 = vadd.f32 %v376, 2.0
        %v391 = vadd.f32 %v378, 2.0
        %v392 = vadd.f32 %v380, 2.0
        %v393 = vadd.f32 %v382, 2.0
        %v394 = vadd.f32 %v384, 2.0
        %v395 = vadd.f32 %v386, 2.0
        %v396 = vadd.f32 %v388, 2.0
        %v397 = vmul.f32 %v374, %v389
        %v398 = vmul.f32 %v376, %v390
        %v399 = vmul.f32 %v378, %v391
        %v400 = vmul.f32 %v380, %v392
        %v401 = vmul.f32 %v382, %v393
        %v402 = vmul.f32 %v384, %v394
        %v403 = vmul.f32 %v386, %v395
        %v404 = vmul.f32 %v388, %v396
        %v405 = vadd.f32 %v397, 2.0
        %v406 = vadd.f32 %v398, 2.0
        %v407 = vadd.f32 %v399, 2.0
        %v408 = vadd.f32 %v400, 2.0
        %v409 = vadd.f32 %v401, 2.0
        %v410 = vadd.f32 %v402, 2.0
        %v411 = vadd.f32 %v403, 2.0
        %v412 = vadd.f32 %v404, 2.0
        %v413 = vrcp.pop %v405
        %v414 = vrcp.pop %v406
        %v415 = vrcp.pop %v407
        %v416 = vrcp.pop %v408
        %v417 = vrcp.pop %v409
        %v418 = vrcp.pop %v410
        %v419 = vrcp.pop %v411
        %v420 = vrcp.pop %v412
        %v421 = vmul.f32 %v397, %v413
        %v422 = vmul.f32 %v398, %v414
        %v423 = vmul.f32 %v399, %v415
        %v424 = vmul.f32 %v400, %v416
        %v425 = vmul.f32 %v401, %v417
        %v426 = vmul.f32 %v402, %v418
        %v427 = vmul.f32 %v403, %v419
        %v428 = vmul.f32 %v404, %v420
        %v429 = vmul.f32 %v343, %v421
        %v430 = vmul.f32 %v345, %v422
        %v431 = vmul.f32 %v349, %v423
        %v432 = vmul.f32 %v351, %v424
        %v433 = vmul.f32 %v355, %v425
        %v434 = vmul.f32 %v357, %v426
        %v435 = vmul.f32 %v361, %v427
        %v436 = vmul.f32 %v363, %v428
        %438 = vset.pattern.permute.xlu0 0
        %439 = vperm.xlu0 %438, %v203
        %v440 = vpop.permute.xlu0 %439
        %443 = vset.pattern.permute.xlu0 0
        %444 = vperm.xlu0 %443, %v204
        %v445 = vpop.permute.xlu0 %444
        %448 = vset.pattern.permute.xlu0 0
        %449 = vperm.xlu0 %448, %v205
        %v450 = vpop.permute.xlu0 %449
        %453 = vset.pattern.permute.xlu0 0
        %454 = vperm.xlu0 %453, %v206
        %v455 = vpop.permute.xlu0 %454
        %vm457 = vcmask 261120
        %v459 = vsel %vm457, %v198, 0
        %v462 = vsel %vm457, %v199, 0
        %v465 = vsel %vm457, %v200, 0
        %v468 = vsel %vm457, %v201, 0
        %470 = vmatprep.subr.mxu0 0.0
        %471 = vmatpush1.msra.mxu0 0.0
        %472 = vmatprep.subr.mxu0 0.0
        %473 = vmatpush1.msra.mxu0 0.0
        %474 = vmatprep.subr.mxu0 0.0
        %475 = vmatpush1.msra.mxu0 0.0
        %476 = vmatprep.subr.mxu0 0.0
        %477 = vmatpush1.msra.mxu0 0.0
        %478 = vmatprep.subr.mxu0 0.0
        %479 = vmatpush1.msra.mxu0 0.0
        %480 = vmatprep.subr.mxu0 0.0
        %481 = vmatpush1.msra.mxu0 0.0
        %482 = vmatprep.subr.mxu0 0.0
        %483 = vmatpush1.msra.mxu0 0.0
        %484 = vmatprep.subr.mxu0 0.0
        %485 = vmatpush1.msra.mxu0 0.0
        %486 = vmatprep.subr.mxu0 0.0
        %487 = vmatpush1.msra.mxu0 0.0
        %488 = vmatprep.subr.mxu0 0.0
        %489 = vmatpush1.msra.mxu0 0.0
        %490 = vmatprep.subr.mxu0 0.0
        %491 = vmatpush1.msra.mxu0 0.0
        %492 = vmatprep.subr.mxu0 0.0
        %493 = vmatpush1.msra.mxu0 0.0
        %494 = vmatprep.subr.mxu0 %v436
        %495 = vmatpush1.msra.mxu0 %v435
        %496 = vmatprep.subr.mxu0 %v434
        %497 = vmatpush1.msra.mxu0 %v433
        %498 = vmatprep.subr.mxu0 %v432
        %499 = vmatpush1.msra.mxu0 %v431
        %500 = vmatprep.subr.mxu0 %v430
        %501 = vmatpush1.msra.mxu0 %v429
        %502 = vmatprep.subr.mxu0 0.0
        %503 = vmatpush2.msra.mxu0 0.0
        %504 = vmatprep.subr.mxu0 0.0
        %505 = vmatpush2.msra.mxu0 0.0
        %506 = vmatprep.subr.mxu0 0.0
        %507 = vmatpush2.msra.mxu0 0.0
        %508 = vmatprep.subr.mxu0 0.0
        %509 = vmatpush2.msra.mxu0 0.0
        %510 = vmatprep.subr.mxu0 0.0
        %511 = vmatpush2.msra.mxu0 0.0
        %512 = vmatprep.subr.mxu0 0.0
        %513 = vmatpush2.msra.mxu0 0.0
        %514 = vmatprep.subr.mxu0 0.0
        %515 = vmatpush2.msra.mxu0 0.0
        %516 = vmatprep.subr.mxu0 0.0
        %517 = vmatpush2.msra.mxu0 0.0
        %518 = vmatprep.subr.mxu0 0.0
        %519 = vmatpush2.msra.mxu0 0.0
        %520 = vmatprep.subr.mxu0 0.0
        %521 = vmatpush2.msra.mxu0 0.0
        %522 = vmatprep.subr.mxu0 0.0
        %523 = vmatpush2.msra.mxu0 0.0
        %524 = vmatprep.subr.mxu0 0.0
        %525 = vmatpush2.msra.mxu0 0.0
        %526 = vmatprep.subr.mxu0 0.0
        %527 = vmatpush2.msra.mxu0 0.0
        %528 = vmatprep.subr.mxu0 0.0
        %529 = vmatpush2.msra.mxu0 0.0
        %530 = vmatprep.subr.mxu0 0.0
        %531 = vmatpush2.msra.mxu0 0.0
        %532 = vmatprep.subr.mxu0 0.0
        %533 = vmatpush2.msra.mxu0 0.0
        %534 = vmatprep.mubr.f32.mxu0 0.0
        %535 = vmatmul.mubr.f32.gmra.mxu0 %v459
        %v536 = vpop.f32.mrf.mxu0
        %v537 = vadd.f32 %v440, %v536
        %v538 = vpop.f32.mrf.mxu0
        %v539 = vadd.f32 %v440, %v538
        %540 = vmatprep.mubr.f32.mxu0 0.0
        %541 = vmatmul.mubr.f32.gmra.mxu0 %v462
        %v542 = vpop.f32.mrf.mxu0
        %v543 = vadd.f32 %v445, %v542
        %v544 = vpop.f32.mrf.mxu0
        %v545 = vadd.f32 %v445, %v544
        %546 = vmatprep.mubr.f32.mxu0 0.0
        %547 = vmatmul.mubr.f32.gmra.mxu0 %v465
        %v548 = vpop.f32.mrf.mxu0
        %v549 = vadd.f32 %v450, %v548
        %v550 = vpop.f32.mrf.mxu0
        %v551 = vadd.f32 %v450, %v550
        %552 = vmatprep.mubr.f32.mxu0 0.0
        %553 = vmatmul.mubr.f32.gmra.mxu0 %v468
        %v554 = vpop.f32.mrf.mxu0
        %v555 = vadd.f32 %v455, %v554
        %v556 = vpop.f32.mrf.mxu0
        %v557 = vadd.f32 %v455, %v556
        %558 = vdwg.mxu0
        %v559 = vmin.f32 %v537, 20.0
        %v560 = vmin.f32 %v539, 20.0
        %v561 = vmin.f32 %v543, 20.0
        %v562 = vmin.f32 %v545, 20.0
        %v563 = vmin.f32 %v549, 20.0
        %v564 = vmin.f32 %v551, 20.0
        %v565 = vmin.f32 %v555, 20.0
        %v566 = vmin.f32 %v557, 20.0
        %v567 = vmul.f32 %v559, 1.442695
        %v568 = vpow.pop %v567
        %v569 = vmul.f32 %v560, 1.442695
        %v570 = vpow.pop %v569
        %v571 = vmul.f32 %v561, 1.442695
        %v572 = vpow.pop %v571
        %v573 = vmul.f32 %v562, 1.442695
        %v574 = vpow.pop %v573
        %v575 = vmul.f32 %v563, 1.442695
        %v576 = vpow.pop %v575
        %v577 = vmul.f32 %v564, 1.442695
        %v578 = vpow.pop %v577
        %v579 = vmul.f32 %v565, 1.442695
        %v580 = vpow.pop %v579
        %v581 = vmul.f32 %v566, 1.442695
        %v582 = vpow.pop %v581
        %v583 = vadd.f32 %v568, 2.0
        %v584 = vadd.f32 %v570, 2.0
        %v585 = vadd.f32 %v572, 2.0
        %v586 = vadd.f32 %v574, 2.0
        %v587 = vadd.f32 %v576, 2.0
        %v588 = vadd.f32 %v578, 2.0
        %v589 = vadd.f32 %v580, 2.0
        %v590 = vadd.f32 %v582, 2.0
        %v591 = vmul.f32 %v568, %v583
        %v592 = vmul.f32 %v570, %v584
        %v593 = vmul.f32 %v572, %v585
        %v594 = vmul.f32 %v574, %v586
        %v595 = vmul.f32 %v576, %v587
        %v596 = vmul.f32 %v578, %v588
        %v597 = vmul.f32 %v580, %v589
        %v598 = vmul.f32 %v582, %v590
        %v599 = vadd.f32 %v591, 2.0
        %v600 = vadd.f32 %v592, 2.0
        %v601 = vadd.f32 %v593, 2.0
        %v602 = vadd.f32 %v594, 2.0
        %v603 = vadd.f32 %v595, 2.0
        %v604 = vadd.f32 %v596, 2.0
        %v605 = vadd.f32 %v597, 2.0
        %v606 = vadd.f32 %v598, 2.0
        %v607 = vrcp.pop %v599
        %v608 = vrcp.pop %v600
        %v609 = vrcp.pop %v601
        %v610 = vrcp.pop %v602
        %v611 = vrcp.pop %v603
        %v612 = vrcp.pop %v604
        %v613 = vrcp.pop %v605
        %v614 = vrcp.pop %v606
        %v615 = vmul.f32 %v591, %v607
        %v616 = vmul.f32 %v592, %v608
        %v617 = vmul.f32 %v593, %v609
        %v618 = vmul.f32 %v594, %v610
        %v619 = vmul.f32 %v595, %v611
        %v620 = vmul.f32 %v596, %v612
        %v621 = vmul.f32 %v597, %v613
        %v622 = vmul.f32 %v598, %v614
        %v623 = vmul.f32 %v537, %v615
        %v624 = vmul.f32 %v539, %v616
        %v625 = vmul.f32 %v543, %v617
        %v626 = vmul.f32 %v545, %v618
        %v627 = vmul.f32 %v549, %v619
        %v628 = vmul.f32 %v551, %v620
        %v629 = vmul.f32 %v555, %v621
        %v630 = vmul.f32 %v557, %v622
        %632 = vset.pattern.permute.xlu0 0
        %633 = vperm.xlu0 %632, %v210
        %v634 = vpop.permute.xlu0 %633
        %v637 = vsel %vm457, %v208, 0
        %639 = vmatprep.subr.mxu0 0.0
        %640 = vmatpush1.msra.mxu0 0.0
        %641 = vmatprep.subr.mxu0 0.0
        %642 = vmatpush1.msra.mxu0 0.0
        %643 = vmatprep.subr.mxu0 0.0
        %644 = vmatpush1.msra.mxu0 0.0
        %645 = vmatprep.subr.mxu0 0.0
        %646 = vmatpush1.msra.mxu0 0.0
        %647 = vmatprep.subr.mxu0 0.0
        %648 = vmatpush1.msra.mxu0 0.0
        %649 = vmatprep.subr.mxu0 0.0
        %650 = vmatpush1.msra.mxu0 0.0
        %651 = vmatprep.subr.mxu0 0.0
        %652 = vmatpush1.msra.mxu0 0.0
        %653 = vmatprep.subr.mxu0 0.0
        %654 = vmatpush1.msra.mxu0 0.0
        %655 = vmatprep.subr.mxu0 0.0
        %656 = vmatpush1.msra.mxu0 0.0
        %657 = vmatprep.subr.mxu0 0.0
        %658 = vmatpush1.msra.mxu0 0.0
        %659 = vmatprep.subr.mxu0 0.0
        %660 = vmatpush1.msra.mxu0 0.0
        %661 = vmatprep.subr.mxu0 0.0
        %662 = vmatpush1.msra.mxu0 0.0
        %663 = vmatprep.subr.mxu0 %v630
        %664 = vmatpush1.msra.mxu0 %v629
        %665 = vmatprep.subr.mxu0 %v628
        %666 = vmatpush1.msra.mxu0 %v627
        %667 = vmatprep.subr.mxu0 %v626
        %668 = vmatpush1.msra.mxu0 %v625
        %669 = vmatprep.subr.mxu0 %v624
        %670 = vmatpush1.msra.mxu0 %v623
        %671 = vmatprep.subr.mxu0 0.0
        %672 = vmatpush2.msra.mxu0 0.0
        %673 = vmatprep.subr.mxu0 0.0
        %674 = vmatpush2.msra.mxu0 0.0
        %675 = vmatprep.subr.mxu0 0.0
        %676 = vmatpush2.msra.mxu0 0.0
        %677 = vmatprep.subr.mxu0 0.0
        %678 = vmatpush2.msra.mxu0 0.0
        %679 = vmatprep.subr.mxu0 0.0
        %680 = vmatpush2.msra.mxu0 0.0
        %681 = vmatprep.subr.mxu0 0.0
        %682 = vmatpush2.msra.mxu0 0.0
        %683 = vmatprep.subr.mxu0 0.0
        %684 = vmatpush2.msra.mxu0 0.0
        %685 = vmatprep.subr.mxu0 0.0
        %686 = vmatpush2.msra.mxu0 0.0
        %687 = vmatprep.subr.mxu0 0.0
        %688 = vmatpush2.msra.mxu0 0.0
        %689 = vmatprep.subr.mxu0 0.0
        %690 = vmatpush2.msra.mxu0 0.0
        %691 = vmatprep.subr.mxu0 0.0
        %692 = vmatpush2.msra.mxu0 0.0
        %693 = vmatprep.subr.mxu0 0.0
        %694 = vmatpush2.msra.mxu0 0.0
        %695 = vmatprep.subr.mxu0 0.0
        %696 = vmatpush2.msra.mxu0 0.0
        %697 = vmatprep.subr.mxu0 0.0
        %698 = vmatpush2.msra.mxu0 0.0
        %699 = vmatprep.subr.mxu0 0.0
        %700 = vmatpush2.msra.mxu0 0.0
        %701 = vmatprep.subr.mxu0 0.0
        %702 = vmatpush2.msra.mxu0 0.0
        %703 = vmatprep.mubr.f32.mxu0 0.0
        %704 = vmatmul.mubr.f32.gmra.mxu0 %v637
        %v705 = vpop.f32.mrf.mxu0
        %v706 = vadd.f32 %v634, %v705
        %v707 = vpop.f32.mrf.mxu0
        %v708 = vadd.f32 %v634, %v707
        %709 = vdwg.mxu0
        %v710 = vmin.f32 %v706, 20.0
        %v711 = vmin.f32 %v708, 20.0
        %v712 = vmul.f32 %v710, 1.442695
        %v713 = vpow.pop %v712
        %v714 = vmul.f32 %v711, 1.442695
        %v715 = vpow.pop %v714
        %v716 = vadd.f32 %v713, 2.0
        %v717 = vadd.f32 %v715, 2.0
        %v718 = vmul.f32 %v713, %v716
        %v719 = vmul.f32 %v715, %v717
        %v720 = vadd.f32 %v718, 2.0
        %v721 = vadd.f32 %v719, 2.0
        %v722 = vrcp.pop %v720
        %v723 = vrcp.pop %v721
        %v724 = vmul.f32 %v718, %v722
        %v725 = vmul.f32 %v719, %v723
        %v726 = vmul.f32 %v706, %v724
        %v727 = vmul.f32 %v708, %v725
        %729 = vset.pattern.permute.xlu0 0
        %730 = vperm.xlu0 %729, %v217
        %v731 = vpop.permute.xlu0 %730
        %734 = vset.pattern.permute.xlu0 0
        %735 = vperm.xlu0 %734, %v218
        %v736 = vpop.permute.xlu0 %735
        %739 = vset.pattern.permute.xlu0 0
        %740 = vperm.xlu0 %739, %v219
        %v741 = vpop.permute.xlu0 %740
        %744 = vset.pattern.permute.xlu0 0
        %745 = vperm.xlu0 %744, %v220
        %v746 = vpop.permute.xlu0 %745
        %v749 = vsel %vm258, %v212, 0
        %v752 = vsel %vm258, %v213, 0
        %v755 = vsel %vm258, %v214, 0
        %v758 = vsel %vm258, %v215, 0
        %v761 = vsel %vm271, %v726, 0
        %v764 = vsel %vm271, %v727, 0
        %766 = vmatprep.subr.mxu0 0.0
        %767 = vmatpush1.msra.mxu0 0.0
        %768 = vmatprep.subr.mxu0 0.0
        %769 = vmatpush1.msra.mxu0 0.0
        %770 = vmatprep.subr.mxu0 0.0
        %771 = vmatpush1.msra.mxu0 0.0
        %772 = vmatprep.subr.mxu0 0.0
        %773 = vmatpush1.msra.mxu0 0.0
        %774 = vmatprep.subr.mxu0 0.0
        %775 = vmatpush1.msra.mxu0 0.0
        %776 = vmatprep.subr.mxu0 0.0
        %777 = vmatpush1.msra.mxu0 0.0
        %778 = vmatprep.subr.mxu0 0.0
        %779 = vmatpush1.msra.mxu0 0.0
        %780 = vmatprep.subr.mxu0 0.0
        %781 = vmatpush1.msra.mxu0 0.0
        %782 = vmatprep.subr.mxu0 0.0
        %783 = vmatpush1.msra.mxu0 0.0
        %784 = vmatprep.subr.mxu0 0.0
        %785 = vmatpush1.msra.mxu0 0.0
        %786 = vmatprep.subr.mxu0 0.0
        %787 = vmatpush1.msra.mxu0 0.0
        %788 = vmatprep.subr.mxu0 0.0
        %789 = vmatpush1.msra.mxu0 0.0
        %790 = vmatprep.subr.mxu0 0.0
        %791 = vmatpush1.msra.mxu0 0.0
        %792 = vmatprep.subr.mxu0 0.0
        %793 = vmatpush1.msra.mxu0 0.0
        %794 = vmatprep.subr.mxu0 0.0
        %795 = vmatpush1.msra.mxu0 0.0
        %796 = vmatprep.subr.mxu0 %v764
        %797 = vmatpush1.msra.mxu0 %v761
        %798 = vmatprep.subr.mxu0 0.0
        %799 = vmatpush2.msra.mxu0 0.0
        %800 = vmatprep.subr.mxu0 0.0
        %801 = vmatpush2.msra.mxu0 0.0
        %802 = vmatprep.subr.mxu0 0.0
        %803 = vmatpush2.msra.mxu0 0.0
        %804 = vmatprep.subr.mxu0 0.0
        %805 = vmatpush2.msra.mxu0 0.0
        %806 = vmatprep.subr.mxu0 0.0
        %807 = vmatpush2.msra.mxu0 0.0
        %808 = vmatprep.subr.mxu0 0.0
        %809 = vmatpush2.msra.mxu0 0.0
        %810 = vmatprep.subr.mxu0 0.0
        %811 = vmatpush2.msra.mxu0 0.0
        %812 = vmatprep.subr.mxu0 0.0
        %813 = vmatpush2.msra.mxu0 0.0
        %814 = vmatprep.subr.mxu0 0.0
        %815 = vmatpush2.msra.mxu0 0.0
        %816 = vmatprep.subr.mxu0 0.0
        %817 = vmatpush2.msra.mxu0 0.0
        %818 = vmatprep.subr.mxu0 0.0
        %819 = vmatpush2.msra.mxu0 0.0
        %820 = vmatprep.subr.mxu0 0.0
        %821 = vmatpush2.msra.mxu0 0.0
        %822 = vmatprep.subr.mxu0 0.0
        %823 = vmatpush2.msra.mxu0 0.0
        %824 = vmatprep.subr.mxu0 0.0
        %825 = vmatpush2.msra.mxu0 0.0
        %826 = vmatprep.subr.mxu0 0.0
        %827 = vmatpush2.msra.mxu0 0.0
        %828 = vmatprep.subr.mxu0 0.0
        %829 = vmatpush2.msra.mxu0 0.0
        %830 = vmatprep.mubr.f32.mxu0 0.0
        %831 = vmatmul.mubr.f32.gmra.mxu0 %v749
        %v832 = vpop.f32.mrf.mxu0
        %v833 = vadd.f32 %v731, %v832
        %v834 = vpop.f32.mrf.mxu0
        %v835 = vadd.f32 %v731, %v834
        %836 = vmatprep.mubr.f32.mxu0 0.0
        %837 = vmatmul.mubr.f32.gmra.mxu0 %v752
        %v838 = vpop.f32.mrf.mxu0
        %v839 = vadd.f32 %v736, %v838
        %v840 = vpop.f32.mrf.mxu0
        %v841 = vadd.f32 %v736, %v840
        %842 = vmatprep.mubr.f32.mxu0 0.0
        %843 = vmatmul.mubr.f32.gmra.mxu0 %v755
        %v844 = vpop.f32.mrf.mxu0
        %v845 = vadd.f32 %v741, %v844
        %v846 = vpop.f32.mrf.mxu0
        %v847 = vadd.f32 %v741, %v846
        %848 = vmatprep.mubr.f32.mxu0 0.0
        %849 = vmatmul.mubr.f32.gmra.mxu0 %v758
        %v850 = vpop.f32.mrf.mxu0
        %v851 = vadd.f32 %v746, %v850
        %v852 = vpop.f32.mrf.mxu0
        %v853 = vadd.f32 %v746, %v852
        %854 = vdwg.mxu0
        %v855 = vmin.f32 %v833, 20.0
        %v856 = vmin.f32 %v835, 20.0
        %v857 = vmin.f32 %v839, 20.0
        %v858 = vmin.f32 %v841, 20.0
        %v859 = vmin.f32 %v845, 20.0
        %v860 = vmin.f32 %v847, 20.0
        %v861 = vmin.f32 %v851, 20.0
        %v862 = vmin.f32 %v853, 20.0
        %v863 = vmul.f32 %v855, 1.442695
        %v864 = vpow.pop %v863
        %v865 = vmul.f32 %v856, 1.442695
        %v866 = vpow.pop %v865
        %v867 = vmul.f32 %v857, 1.442695
        %v868 = vpow.pop %v867
        %v869 = vmul.f32 %v858, 1.442695
        %v870 = vpow.pop %v869
        %v871 = vmul.f32 %v859, 1.442695
        %v872 = vpow.pop %v871
        %v873 = vmul.f32 %v860, 1.442695
        %v874 = vpow.pop %v873
        %v875 = vmul.f32 %v861, 1.442695
        %v876 = vpow.pop %v875
        %v877 = vmul.f32 %v862, 1.442695
        %v878 = vpow.pop %v877
        %v879 = vadd.f32 %v864, 2.0
        %v880 = vadd.f32 %v866, 2.0
        %v881 = vadd.f32 %v868, 2.0
        %v882 = vadd.f32 %v870, 2.0
        %v883 = vadd.f32 %v872, 2.0
        %v884 = vadd.f32 %v874, 2.0
        %v885 = vadd.f32 %v876, 2.0
        %v886 = vadd.f32 %v878, 2.0
        %v887 = vmul.f32 %v864, %v879
        %v888 = vmul.f32 %v866, %v880
        %v889 = vmul.f32 %v868, %v881
        %v890 = vmul.f32 %v870, %v882
        %v891 = vmul.f32 %v872, %v883
        %v892 = vmul.f32 %v874, %v884
        %v893 = vmul.f32 %v876, %v885
        %v894 = vmul.f32 %v878, %v886
        %v895 = vadd.f32 %v887, 2.0
        %v896 = vadd.f32 %v888, 2.0
        %v897 = vadd.f32 %v889, 2.0
        %v898 = vadd.f32 %v890, 2.0
        %v899 = vadd.f32 %v891, 2.0
        %v900 = vadd.f32 %v892, 2.0
        %v901 = vadd.f32 %v893, 2.0
        %v902 = vadd.f32 %v894, 2.0
        %v903 = vrcp.pop %v895
        %v904 = vrcp.pop %v896
        %v905 = vrcp.pop %v897
        %v906 = vrcp.pop %v898
        %v907 = vrcp.pop %v899
        %v908 = vrcp.pop %v900
        %v909 = vrcp.pop %v901
        %v910 = vrcp.pop %v902
        %v911 = vmul.f32 %v887, %v903
        %v912 = vmul.f32 %v888, %v904
        %v913 = vmul.f32 %v889, %v905
        %v914 = vmul.f32 %v890, %v906
        %v915 = vmul.f32 %v891, %v907
        %v916 = vmul.f32 %v892, %v908
        %v917 = vmul.f32 %v893, %v909
        %v918 = vmul.f32 %v894, %v910
        %v919 = vmul.f32 %v833, %v911
        %v920 = vmul.f32 %v835, %v912
        %v921 = vmul.f32 %v839, %v913
        %v922 = vmul.f32 %v841, %v914
        %v923 = vmul.f32 %v845, %v915
        %v924 = vmul.f32 %v847, %v916
        %v925 = vmul.f32 %v851, %v917
        %v926 = vmul.f32 %v853, %v918
        %928 = vset.pattern.permute.xlu0 0
        %929 = vperm.xlu0 %928, %v227
        %v930 = vpop.permute.xlu0 %929
        %933 = vset.pattern.permute.xlu0 0
        %934 = vperm.xlu0 %933, %v228
        %v935 = vpop.permute.xlu0 %934
        %938 = vset.pattern.permute.xlu0 0
        %939 = vperm.xlu0 %938, %v229
        %v940 = vpop.permute.xlu0 %939
        %943 = vset.pattern.permute.xlu0 0
        %944 = vperm.xlu0 %943, %v230
        %v945 = vpop.permute.xlu0 %944
        %v948 = vsel %vm457, %v222, 0
        %v951 = vsel %vm457, %v223, 0
        %v954 = vsel %vm457, %v224, 0
        %v957 = vsel %vm457, %v225, 0
        %959 = vmatprep.subr.mxu0 0.0
        %960 = vmatpush1.msra.mxu0 0.0
        %961 = vmatprep.subr.mxu0 0.0
        %962 = vmatpush1.msra.mxu0 0.0
        %963 = vmatprep.subr.mxu0 0.0
        %964 = vmatpush1.msra.mxu0 0.0
        %965 = vmatprep.subr.mxu0 0.0
        %966 = vmatpush1.msra.mxu0 0.0
        %967 = vmatprep.subr.mxu0 0.0
        %968 = vmatpush1.msra.mxu0 0.0
        %969 = vmatprep.subr.mxu0 0.0
        %970 = vmatpush1.msra.mxu0 0.0
        %971 = vmatprep.subr.mxu0 0.0
        %972 = vmatpush1.msra.mxu0 0.0
        %973 = vmatprep.subr.mxu0 0.0
        %974 = vmatpush1.msra.mxu0 0.0
        %975 = vmatprep.subr.mxu0 0.0
        %976 = vmatpush1.msra.mxu0 0.0
        %977 = vmatprep.subr.mxu0 0.0
        %978 = vmatpush1.msra.mxu0 0.0
        %979 = vmatprep.subr.mxu0 0.0
        %980 = vmatpush1.msra.mxu0 0.0
        %981 = vmatprep.subr.mxu0 0.0
        %982 = vmatpush1.msra.mxu0 0.0
        %983 = vmatprep.subr.mxu0 %v926
        %984 = vmatpush1.msra.mxu0 %v925
        %985 = vmatprep.subr.mxu0 %v924
        %986 = vmatpush1.msra.mxu0 %v923
        %987 = vmatprep.subr.mxu0 %v922
        %988 = vmatpush1.msra.mxu0 %v921
        %989 = vmatprep.subr.mxu0 %v920
        %990 = vmatpush1.msra.mxu0 %v919
        %991 = vmatprep.subr.mxu0 0.0
        %992 = vmatpush2.msra.mxu0 0.0
        %993 = vmatprep.subr.mxu0 0.0
        %994 = vmatpush2.msra.mxu0 0.0
        %995 = vmatprep.subr.mxu0 0.0
        %996 = vmatpush2.msra.mxu0 0.0
        %997 = vmatprep.subr.mxu0 0.0
        %998 = vmatpush2.msra.mxu0 0.0
        %999 = vmatprep.subr.mxu0 0.0
        %1000 = vmatpush2.msra.mxu0 0.0
        %1001 = vmatprep.subr.mxu0 0.0
        %1002 = vmatpush2.msra.mxu0 0.0
        %1003 = vmatprep.subr.mxu0 0.0
        %1004 = vmatpush2.msra.mxu0 0.0
        %1005 = vmatprep.subr.mxu0 0.0
        %1006 = vmatpush2.msra.mxu0 0.0
        %1007 = vmatprep.subr.mxu0 0.0
        %1008 = vmatpush2.msra.mxu0 0.0
        %1009 = vmatprep.subr.mxu0 0.0
        %1010 = vmatpush2.msra.mxu0 0.0
        %1011 = vmatprep.subr.mxu0 0.0
        %1012 = vmatpush2.msra.mxu0 0.0
        %1013 = vmatprep.subr.mxu0 0.0
        %1014 = vmatpush2.msra.mxu0 0.0
        %1015 = vmatprep.subr.mxu0 0.0
        %1016 = vmatpush2.msra.mxu0 0.0
        %1017 = vmatprep.subr.mxu0 0.0
        %1018 = vmatpush2.msra.mxu0 0.0
        %1019 = vmatprep.subr.mxu0 0.0
        %1020 = vmatpush2.msra.mxu0 0.0
        %1021 = vmatprep.subr.mxu0 0.0
        %1022 = vmatpush2.msra.mxu0 0.0
        %1023 = vmatprep.mubr.f32.mxu0 0.0
        %1024 = vmatmul.mubr.f32.gmra.mxu0 %v948
        %v1025 = vpop.f32.mrf.mxu0
        %v1026 = vadd.f32 %v930, %v1025
        %v1027 = vpop.f32.mrf.mxu0
        %v1028 = vadd.f32 %v930, %v1027
        %1029 = vmatprep.mubr.f32.mxu0 0.0
        %1030 = vmatmul.mubr.f32.gmra.mxu0 %v951
        %v1031 = vpop.f32.mrf.mxu0
        %v1032 = vadd.f32 %v935, %v1031
        %v1033 = vpop.f32.mrf.mxu0
        %v1034 = vadd.f32 %v935, %v1033
        %1035 = vmatprep.mubr.f32.mxu0 0.0
        %1036 = vmatmul.mubr.f32.gmra.mxu0 %v954
        %v1037 = vpop.f32.mrf.mxu0
        %v1038 = vadd.f32 %v940, %v1037
        %v1039 = vpop.f32.mrf.mxu0
        %v1040 = vadd.f32 %v940, %v1039
        %1041 = vmatprep.mubr.f32.mxu0 0.0
        %1042 = vmatmul.mubr.f32.gmra.mxu0 %v957
        %v1043 = vpop.f32.mrf.mxu0
        %v1044 = vadd.f32 %v945, %v1043
        %v1045 = vpop.f32.mrf.mxu0
        %v1046 = vadd.f32 %v945, %v1045
        %1047 = vdwg.mxu0
        %v1048 = vmin.f32 %v1026, 20.0
        %v1049 = vmin.f32 %v1028, 20.0
        %v1050 = vmin.f32 %v1032, 20.0
        %v1051 = vmin.f32 %v1034, 20.0
        %v1052 = vmin.f32 %v1038, 20.0
        %v1053 = vmin.f32 %v1040, 20.0
        %v1054 = vmin.f32 %v1044, 20.0
        %v1055 = vmin.f32 %v1046, 20.0
        %v1056 = vmul.f32 %v1048, 1.442695
        %v1057 = vpow.pop %v1056
        %v1058 = vmul.f32 %v1049, 1.442695
        %v1059 = vpow.pop %v1058
        %v1060 = vmul.f32 %v1050, 1.442695
        %v1061 = vpow.pop %v1060
        %v1062 = vmul.f32 %v1051, 1.442695
        %v1063 = vpow.pop %v1062
        %v1064 = vmul.f32 %v1052, 1.442695
        %v1065 = vpow.pop %v1064
        %v1066 = vmul.f32 %v1053, 1.442695
        %v1067 = vpow.pop %v1066
        %v1068 = vmul.f32 %v1054, 1.442695
        %v1069 = vpow.pop %v1068
        %v1070 = vmul.f32 %v1055, 1.442695
        %v1071 = vpow.pop %v1070
        %v1072 = vadd.f32 %v1057, 2.0
        %v1073 = vadd.f32 %v1059, 2.0
        %v1074 = vadd.f32 %v1061, 2.0
        %v1075 = vadd.f32 %v1063, 2.0
        %v1076 = vadd.f32 %v1065, 2.0
        %v1077 = vadd.f32 %v1067, 2.0
        %v1078 = vadd.f32 %v1069, 2.0
        %v1079 = vadd.f32 %v1071, 2.0
        %v1080 = vmul.f32 %v1057, %v1072
        %v1081 = vmul.f32 %v1059, %v1073
        %v1082 = vmul.f32 %v1061, %v1074
        %v1083 = vmul.f32 %v1063, %v1075
        %v1084 = vmul.f32 %v1065, %v1076
        %v1085 = vmul.f32 %v1067, %v1077
        %v1086 = vmul.f32 %v1069, %v1078
        %v1087 = vmul.f32 %v1071, %v1079
        %v1088 = vadd.f32 %v1080, 2.0
        %v1089 = vadd.f32 %v1081, 2.0
        %v1090 = vadd.f32 %v1082, 2.0
        %v1091 = vadd.f32 %v1083, 2.0
        %v1092 = vadd.f32 %v1084, 2.0
        %v1093 = vadd.f32 %v1085, 2.0
        %v1094 = vadd.f32 %v1086, 2.0
        %v1095 = vadd.f32 %v1087, 2.0
        %v1096 = vrcp.pop %v1088
        %v1097 = vrcp.pop %v1089
        %v1098 = vrcp.pop %v1090
        %v1099 = vrcp.pop %v1091
        %v1100 = vrcp.pop %v1092
        %v1101 = vrcp.pop %v1093
        %v1102 = vrcp.pop %v1094
        %v1103 = vrcp.pop %v1095
        %v1104 = vmul.f32 %v1080, %v1096
        %v1105 = vmul.f32 %v1081, %v1097
        %v1106 = vmul.f32 %v1082, %v1098
        %v1107 = vmul.f32 %v1083, %v1099
        %v1108 = vmul.f32 %v1084, %v1100
        %v1109 = vmul.f32 %v1085, %v1101
        %v1110 = vmul.f32 %v1086, %v1102
        %v1111 = vmul.f32 %v1087, %v1103
        %v1112 = vmul.f32 %v1026, %v1104
        %v1113 = vmul.f32 %v1028, %v1105
        %v1114 = vmul.f32 %v1032, %v1106
        %v1115 = vmul.f32 %v1034, %v1107
        %v1116 = vmul.f32 %v1038, %v1108
        %v1117 = vmul.f32 %v1040, %v1109
        %v1118 = vmul.f32 %v1044, %v1110
        %v1119 = vmul.f32 %v1046, %v1111
        %1121 = vset.pattern.permute.xlu0 0
        %1122 = vperm.xlu0 %1121, %v234
        %v1123 = vpop.permute.xlu0 %1122
        %v1126 = vsel %vm457, %v232, 0
        %1128 = vmatprep.subr.mxu0 0.0
        %1129 = vmatpush1.msra.mxu0 0.0
        %1130 = vmatprep.subr.mxu0 0.0
        %1131 = vmatpush1.msra.mxu0 0.0
        %1132 = vmatprep.subr.mxu0 0.0
        %1133 = vmatpush1.msra.mxu0 0.0
        %1134 = vmatprep.subr.mxu0 0.0
        %1135 = vmatpush1.msra.mxu0 0.0
        %1136 = vmatprep.subr.mxu0 0.0
        %1137 = vmatpush1.msra.mxu0 0.0
        %1138 = vmatprep.subr.mxu0 0.0
        %1139 = vmatpush1.msra.mxu0 0.0
        %1140 = vmatprep.subr.mxu0 0.0
        %1141 = vmatpush1.msra.mxu0 0.0
        %1142 = vmatprep.subr.mxu0 0.0
        %1143 = vmatpush1.msra.mxu0 0.0
        %1144 = vmatprep.subr.mxu0 0.0
        %1145 = vmatpush1.msra.mxu0 0.0
        %1146 = vmatprep.subr.mxu0 0.0
        %1147 = vmatpush1.msra.mxu0 0.0
        %1148 = vmatprep.subr.mxu0 0.0
        %1149 = vmatpush1.msra.mxu0 0.0
        %1150 = vmatprep.subr.mxu0 0.0
        %1151 = vmatpush1.msra.mxu0 0.0
        %1152 = vmatprep.subr.mxu0 %v1119
        %1153 = vmatpush1.msra.mxu0 %v1118
        %1154 = vmatprep.subr.mxu0 %v1117
        %1155 = vmatpush1.msra.mxu0 %v1116
        %1156 = vmatprep.subr.mxu0 %v1115
        %1157 = vmatpush1.msra.mxu0 %v1114
        %1158 = vmatprep.subr.mxu0 %v1113
        %1159 = vmatpush1.msra.mxu0 %v1112
        %1160 = vmatprep.subr.mxu0 0.0
        %1161 = vmatpush2.msra.mxu0 0.0
        %1162 = vmatprep.subr.mxu0 0.0
        %1163 = vmatpush2.msra.mxu0 0.0
        %1164 = vmatprep.subr.mxu0 0.0
        %1165 = vmatpush2.msra.mxu0 0.0
        %1166 = vmatprep.subr.mxu0 0.0
        %1167 = vmatpush2.msra.mxu0 0.0
        %1168 = vmatprep.subr.mxu0 0.0
        %1169 = vmatpush2.msra.mxu0 0.0
        %1170 = vmatprep.subr.mxu0 0.0
        %1171 = vmatpush2.msra.mxu0 0.0
        %1172 = vmatprep.subr.mxu0 0.0
        %1173 = vmatpush2.msra.mxu0 0.0
        %1174 = vmatprep.subr.mxu0 0.0
        %1175 = vmatpush2.msra.mxu0 0.0
        %1176 = vmatprep.subr.mxu0 0.0
        %1177 = vmatpush2.msra.mxu0 0.0
        %1178 = vmatprep.subr.mxu0 0.0
        %1179 = vmatpush2.msra.mxu0 0.0
        %1180 = vmatprep.subr.mxu0 0.0
        %1181 = vmatpush2.msra.mxu0 0.0
        %1182 = vmatprep.subr.mxu0 0.0
        %1183 = vmatpush2.msra.mxu0 0.0
        %1184 = vmatprep.subr.mxu0 0.0
        %1185 = vmatpush2.msra.mxu0 0.0
        %1186 = vmatprep.subr.mxu0 0.0
        %1187 = vmatpush2.msra.mxu0 0.0
        %1188 = vmatprep.subr.mxu0 0.0
        %1189 = vmatpush2.msra.mxu0 0.0
        %1190 = vmatprep.subr.mxu0 0.0
        %1191 = vmatpush2.msra.mxu0 0.0
        %1192 = vmatprep.mubr.f32.mxu0 0.0
        %1193 = vmatmul.mubr.f32.gmra.mxu0 %v1126
        %v1194 = vpop.f32.mrf.mxu0
        %v1195 = vadd.f32 %v1123, %v1194
        %v1196 = vpop.f32.mrf.mxu0
        %v1197 = vadd.f32 %v1123, %v1196
        %1198 = vdwg.mxu0
        %v1199 = vmax.f32 %v1195, 0.0
        %v1200 = vmax.f32 %v1197, 0.0
        %v1201 = vand.u32 2147483647, %v1195
        %v1202 = vand.u32 2147483647, %v1197
        %v1203 = vsub.f32 0.0, %v1201
        %v1204 = vsub.f32 0.0, %v1202
        %v1205 = vmul.f32 %v1203, 1.442695
        %v1206 = vpow.pop %v1205
        %v1207 = vmul.f32 %v1204, 1.442695
        %v1208 = vpow.pop %v1207
        %v1209 = vadd.f32 %v1206, 1.0
        %v1210 = vlog2.pop %v1209
        %v1211 = vmul.f32 %v1210, 0.6931472
        %v1212 = vmul.f32 -0.5, %v1206
        %v1213 = vadd.f32 %v1212, 1.0
        %v1214 = vmul.f32 %v1213, %v1206
        %v1215 = vand.u32 2147483647, %v1206
        %vm1216 = vcmp.lt.f32.partialorder %v1215, 0.0004427343
        %v1217 = vsel %vm1216, %v1214, %v1211
        %v1218 = vadd.f32 %v1208, 1.0
        %v1219 = vlog2.pop %v1218
        %v1220 = vmul.f32 %v1219, 0.6931472
        %v1221 = vmul.f32 -0.5, %v1208
        %v1222 = vadd.f32 %v1221, 1.0
        %v1223 = vmul.f32 %v1222, %v1208
        %v1224 = vand.u32 2147483647, %v1208
        %vm1225 = vcmp.lt.f32.partialorder %v1224, 0.0004427343
        %v1226 = vsel %vm1225, %v1223, %v1220
        %v1227 = vadd.f32 %v1199, %v1217
        %v1228 = vadd.f32 %v1200, %v1226
        %v1231 = vcombine.low %v1227, %v1228
        %v1233 = vunpack.c.l.s4 1966171168
        %v1234 = vunpack.c.0.s8 %v1233
        %v1235 = vlaneseq
        %v1236 = vshrl.u32 %v1235, 7
        %v1237 = vsub.s32 %v1234, %v1236
        %v1238 = vrot.slane %v1231, %v1237
        %v1240 = vunpack.c.l.s4 1966171168
        %v1241 = vunpack.c.0.s8 %v1240
        %v1242 = vlaneseq
        %v1243 = vshrl.u32 %v1242, 7
        %v1244 = vsub.s32 %v1241, %v1243
        %v1245 = vrot.slane %v1238, %v1244
        %v1247 = vlaneseq
        %vm1248 = vcmp.ge.s32.totalorder %v1247, 0
        %vm1249 = vcmp.lt.s32.totalorder %v1247, 256
        %vm1250 = vmand %vm1248, %vm1249
        %1251 = vst.msk [vmem:[%s186] sm:$0x3] %vm1250, %v1245
        %s1252 = sand.u32 %s96, 1
        %s1253 = scalar_lea.sflag [#allocation4], %s1252
        %s1254 = sand.u32 %s96, 1
        %s1255 = smul.addr %s1254, 2
        %s1256 = scalar_lea.vmem [#allocation5], %s1255
        // Predicated region
        $region37: #{lsunit_forward.1} parent=31 // pred_check
          %p1257 = pneg %p106
        $region38: #{lsunit_forward.1} parent=31 // pred_check_branch
          %1259 = sbr.rel (%p1257) target = $region40
        $region39: #{lsunit_forward.1} parent=31 // pred_region
          %s1260 = smul.u32 2, %s20
          %s1262 = ssub.s32 32, 32
          %1263 = vsyncadd %s1253, %s1262
          %s1264 = smul.addr %s1260, 16
          %s1265 = scalar_lea.hbm %s3, %s1264
          %s1267 = sshll.u32 %s1256, 4
          %s1268 = int_to_ptr.vmem [resolvable:$true] %s1267
          %1270 = dma.vmem_to_hbm [thread:$0]  %s1268, 32, %s1265, %s1253
        $region40: #{lsunit_forward.1} parent=31 // pred_fallthru
          _
      $region32: #{lsunit_forward.1} parent=5 // pred_fallthru
        _
      %p1271 = scmp.le.s32.totalorder 2, %s15
      // Predicated region
      $region41: #{lsunit_forward.1} parent=5 // pred_check
        %p1272 = pneg %p1271
      $region42: #{lsunit_forward.1} parent=5 // pred_check_branch
        %1274 = sbr.rel (%p1272) target = $region44
      $region43: #{lsunit_forward.1} parent=5 // pred_region
        %s1275 = ssub.s32 %s15, 2
        // Predicated region
        $region45: #{lsunit_forward.1} parent=43 // pred_check
          %p1276 = pneg %p112
        $region46: #{lsunit_forward.1} parent=43 // pred_check_branch
          %1278 = sbr.rel (%p1276) target = $region48
        $region47: #{lsunit_forward.1} parent=43 // pred_region
          %s1279 = sand.u32 %s97, 1
          %s1280 = scalar_lea.sflag [#allocation4], %s1279
          %s1281 = sand.u32 %s97, 1
          %s1282 = smul.addr %s1281, 2
          %s1283 = scalar_lea.vmem [#allocation5], %s1282
          %1284 = dma.done %s1280, 32
        $region48: #{lsunit_forward.1} parent=43 // pred_fallthru
          _
      $region44: #{lsunit_forward.1} parent=5 // pred_fallthru
        _
    $region6: #{lsunit_forward.1} parent=1 // loop_footer
      %s19 = sadd.s32 1, %s15
    $region7: #{lsunit_forward.1} parent=1 // loop_footer_branch
      %14 = sbr.rel target = $region3
    $region8: #{lsunit_forward.1} parent=1 // loop_exit
      _
    %1285 = vsyncpa [#allocation3], 1
    %s1286 = scalar_lea.sflag [#allocation3], 1
    %1287 = vsyncpa %s1286, 1
    %1288 = vsyncpa [#allocation4], 1
    %s1289 = scalar_lea.sflag [#allocation4], 1
    %1290 = vsyncpa %s1289, 1

</llo_original>
